<compile_context>
chip_gen: v7x
topology: tpu7x:2x2x1
jax: 0.10.0
libtpu: 0.0.40
codegen_flags: <defaults>
</compile_context>

<pallas_src>
import functools

import jax
import jax.numpy as jnp
from jax import lax
from jax.experimental import pallas as pl
from jax.experimental.pallas import tpu as pltpu


def _round_up(x, m):
    return ((x + m - 1) // m) * m


def _spgat_node_kernel(x_ref, w_ref, a_ref, hs_ref, *, alpha, nclass):
    """Per-node preamble, emitted as ONE lane-dense bf16 slab (no partial-lane stores).

    h      = x @ W_pad                      (bm, CP)  -- pad cols of W are 0 so h[:, C:] == 0
    logits = sum(h * a_pad, -1)             (bm, 1)   -- pad cols of a are 0
    s      = exp(-leakyrelu(logits))
    hs     = s * (h + e_C)   ->  hs[:, :C] = s*h,  hs[:, C] = s,  hs[:, C+1:] = 0
    """
    h = jnp.dot(x_ref[...], w_ref[...], preferred_element_type=jnp.float32)
    logits = jnp.sum(h * a_ref[...], axis=-1, keepdims=True)
    lrelu = jnp.where(logits > 0, logits, alpha * logits)
    s = jnp.exp(-lrelu)                                             # (bm, 1)
    col = lax.broadcasted_iota(jnp.int32, h.shape, 1)
    e_c = (col == nclass).astype(h.dtype)                           # 1.0 only at column C
    hs_ref[...] = (s * (h + e_c)).astype(hs_ref.dtype)


def _spgat_spmm_kernel(adj_ref, hs_ref, out_ref, *, nclass):
    """One row tile of the fused SpMM: out = normalize(adj_tile @ hs_resident)."""
    # adj is a {0,1} mask streamed in a narrow dtype (int8); the on-chip cast is free
    # filler since the kernel is DMA-bound.
    adj = adj_ref[...].astype(jnp.bfloat16)
    acc = jnp.dot(adj, hs_ref[...], preferred_element_type=jnp.float32)   # (bm, CP) f32
    rowsum = acc[:, nclass:nclass + 1]
    # Guard isolated rows (no edges): PyTorch would hit 0/0 (NaN); we emit 0 instead.
    denom = jnp.where(rowsum > 0.0, rowsum, 1.0)
    inv = pl.reciprocal(denom, approx=False)      # exact; cost negligible (memory-bound)
    out_ref[...] = (acc * inv).astype(out_ref.dtype)


def spgat_forward(x, W, a, adj, *, alpha=0.2, block_m=256):
    """SpGAT (concat=False) forward.

    `adj` is the dense {0,1} adjacency mask. Callers should pass (and cache) it in a
    narrow dtype (int8 / bf16) and, for hot loops, pre-padded to a multiple of
    `block_m`: this wrapper performs no dtype cast on it, and only pads when needed.
    """
    N, F_in = x.shape
    C = W.shape[1]
    assert adj.shape == (N, N)
    assert block_m % 128 == 0

    CP = _round_up(C + 1, 128)                    # lane-dense fused width: [s*h | s | 0-pad]
    bm = min(block_m, _round_up(N, 128))          # row tile (multiple of 128 -> int8-tiling safe)
    N_pad = _round_up(N, bm)

    # One-time padding of the node axis to the exact tile grid.
    if N_pad != N:
        x = jnp.pad(x, ((0, N_pad - N), (0, 0)))
        adj = jnp.pad(adj, ((0, N_pad - N), (0, N_pad - N)))
    W_pad = jnp.pad(W, ((0, 0), (0, CP - C)))     # tiny (F_in, CP)
    a_pad = jnp.pad(a, ((0, 0), (0, CP - C)))     # tiny (1, CP)

    # ---- Phase 1 (negligible FLOPs): produce the fused lane-dense rhs slab directly.
    hs = pl.pallas_call(
        functools.partial(_spgat_node_kernel, alpha=alpha, nclass=C),
        out_shape=jax.ShapeDtypeStruct((N_pad, CP), jnp.bfloat16),
        grid=(N_pad // bm,),
        in_specs=[
            pl.BlockSpec((bm, F_in), lambda i: (i, 0)),
            pl.BlockSpec((F_in, CP), lambda i: (0, 0)),
            pl.BlockSpec((1, CP), lambda i: (0, 0)),
        ],
        out_specs=pl.BlockSpec((bm, CP), lambda i: (i, 0)),
        compiler_params=pltpu.CompilerParams(dimension_semantics=("parallel",)),
    )(x, W_pad, a_pad)

    # ---- Phase 2 (dominant, HBM-bound): stream adjacency row tiles; hs stays resident
    # in VMEM (constant block index -> fetched once); rowsum rides in lane C of the
    # same MXU dot; output written once per row tile (no scratch accumulator).
    out_padded = pl.pallas_call(
        functools.partial(_spgat_spmm_kernel, nclass=C),
        out_shape=jax.ShapeDtypeStruct((N_pad, CP), jnp.float32),
        grid=(N_pad // bm,),
        in_specs=[
            pl.BlockSpec((bm, N_pad), lambda i: (i, 0)),   # adj row tile, streamed as-is (int8)
            pl.BlockSpec((N_pad, CP), lambda i: (0, 0)),   # fused rhs, VMEM-resident
        ],
        out_specs=pl.BlockSpec((bm, CP), lambda i: (i, 0)),
        compiler_params=pltpu.CompilerParams(
            dimension_semantics=("parallel",),
            # Under v7x's 64 MiB physical VMEM with headroom; plenty for v5e/v6e too.
            vmem_limit_bytes=48 * 1024 * 1024,
        ),
    )(adj, hs)

    return out_padded[:N, :C]


def _reference(x, W, a, adj_mask_f32, alpha=0.2):
    """Pure-JAX dense f32 reference mirroring the PyTorch math."""
    h = x @ W
    logits = h @ a.T
    lrelu = jnp.where(logits > 0, logits, alpha * logits)
    s = jnp.exp(-lrelu)                                    # (N, 1)
    A = adj_mask_f32 * s.T                                 # A[i, j] = mask[i, j] * s[j]
    rowsum = A @ jnp.ones((x.shape[0], 1), jnp.float32)
    h_prime = A @ h
    return h_prime / rowsum


if __name__ == "__main__":
    # SpGAT(nfeat, nhid, nclass, dropout, alpha, nheads) forward only uses nhid -> nclass.
    N, nhid, nclass = 512, 32, 8
    alpha = 0.2

    key = jax.random.PRNGKey(0)
    kx, kw, ka, kadj = jax.random.split(key, 4)

    # Deterministic xavier_normal_-style init (gain = 1.414).
    gain = 1.414
    std_W = gain * (2.0 / (nhid + nclass)) ** 0.5
    std_a = gain * (2.0 / (1 + nclass)) ** 0.5
    W = std_W * jax.random.normal(kw, (nhid, nclass), dtype=jnp.float32)
    a = std_a * jax.random.normal(ka, (1, nclass), dtype=jnp.float32)
    x = jax.random.normal(kx, (N, nhid), dtype=jnp.float32)

    # Dense {0,1} adjacency mask (stands in for adj._indices() COO edges); add
    # self-loops so every row has an edge (matches PyTorch asserts). Built directly
    # in int8 -- no f32->narrow cast in the hot path.
    adj_bool = jnp.logical_or(jax.random.uniform(kadj, (N, N)) < 0.1,
                              jnp.eye(N, dtype=bool))
    adj_i8 = adj_bool.astype(jnp.int8)

    out = spgat_forward(x, W, a, adj_i8, alpha=alpha, block_m=256)
    out = jax.block_until_ready(out)

    ref = _reference(x, W, a, adj_bool.astype(jnp.float32), alpha=alpha)
    assert out.shape == (N, nclass)
    assert not bool(jnp.isnan(out).any()), "NaN in kernel output"
    # bf16 fused-rhs streaming -> compare with a loose tolerance.
    assert jnp.allclose(out, ref, atol=5e-2, rtol=5e-2), "mismatch vs reference"

    print("KERNEL_OK")
</pallas_src>

<mosaic_0001>
module attributes {stable_mosaic.version = 11 : i64} {
  func.func @_spgat_node_kernel(%arg0: i32, %arg1: memref<256x32xf32, #tpu.memory_space<vmem>>, %arg2: memref<32x128xf32, #tpu.memory_space<vmem>>, %arg3: memref<1x128xf32, #tpu.memory_space<vmem>>, %arg4: memref<256x128xbf16, #tpu.memory_space<vmem>>) attributes {dimension_semantics = [#tpu.dimension_semantics<parallel>], iteration_bounds = array<i64: 2>, scalar_prefetch = 0 : i64, scratch_operands = 0 : i64, tpu.core_type = #tpu.core_type<tc>, window_params = [{transform_indices = @transform_0, window_bounds = array<i64: 256, 32>}, {pipeline_mode = #tpu.pipeline_mode<synchronous>, transform_indices = @transform_1, window_bounds = array<i64: 32, 128>}, {pipeline_mode = #tpu.pipeline_mode<synchronous>, transform_indices = @transform_2, window_bounds = array<i64: 1, 128>}, {transform_indices = @transform_3, window_bounds = array<i64: 256, 128>}]} {
    %c0 = arith.constant 0 : index
    %c0_0 = arith.constant 0 : index
    %0 = vector.load %arg1[%c0, %c0_0] : memref<256x32xf32, #tpu.memory_space<vmem>>, vector<256x32xf32>
    %c0_1 = arith.constant 0 : index
    %c0_2 = arith.constant 0 : index
    %1 = vector.load %arg2[%c0_1, %c0_2] : memref<32x128xf32, #tpu.memory_space<vmem>>, vector<32x128xf32>
    %cst = arith.constant dense<0.000000e+00> : vector<256x128xf32>
    %2 = tpu.matmul %0, %1, %cst {dimension_numbers = #tpu.dot_dimension_numbers<[1], [0], [0], [1], [0, 0, 1, 1], [], []>} : vector<256x32xf32>, vector<32x128xf32>, vector<256x128xf32> -> vector<256x128xf32>
    %c0_3 = arith.constant 0 : index
    %c0_4 = arith.constant 0 : index
    %3 = vector.load %arg3[%c0_3, %c0_4] : memref<1x128xf32, #tpu.memory_space<vmem>>, vector<1x128xf32>
    %4 = vector.broadcast %3 : vector<1x128xf32> to vector<256x128xf32>
    %5 = arith.mulf %2, %4 : vector<256x128xf32>
    %cst_5 = arith.constant dense<0.000000e+00> : vector<256xf32>
    %6 = vector.multi_reduction <add>, %5, %cst_5 [1] : vector<256x128xf32> to vector<256xf32>
    %7 = vector.shape_cast %6 : vector<256xf32> to vector<256x1xf32>
    %cst_6 = arith.constant 0.000000e+00 : f32
    %8 = vector.broadcast %cst_6 : f32 to vector<256x1xf32>
    %9 = arith.cmpf ogt, %7, %8 : vector<256x1xf32>
    %cst_7 = arith.constant 2.000000e-01 : f32
    %10 = vector.broadcast %cst_7 : f32 to vector<256x1xf32>
    %11 = arith.mulf %10, %7 : vector<256x1xf32>
    %12 = arith.select %9, %7, %11 : vector<256x1xi1>, vector<256x1xf32>
    %cst_8 = arith.constant 0.000000e+00 : f32
    %13 = vector.broadcast %cst_8 : f32 to vector<256x1xf32>
    %14 = arith.subf %13, %12 : vector<256x1xf32>
    %15 = math.exp %14 : vector<256x1xf32>
    %16 = tpu.iota {dimensions = array<i32: 1>} : vector<256x128xi32>
    %c8_i32 = arith.constant 8 : i32
    %17 = vector.broadcast %c8_i32 : i32 to vector<256x128xi32>
    %18 = arith.cmpi eq, %16, %17 : vector<256x128xi32>
    %19 = arith.extui %18 : vector<256x128xi1> to vector<256x128xi32>
    %20 = arith.sitofp %19 : vector<256x128xi32> to vector<256x128xf32>
    %21 = arith.addf %2, %20 : vector<256x128xf32>
    %22 = vector.broadcast %15 : vector<256x1xf32> to vector<256x128xf32>
    %23 = arith.mulf %22, %21 : vector<256x128xf32>
    %24 = arith.truncf %23 : vector<256x128xf32> to vector<256x128xbf16>
    %c0_9 = arith.constant 0 : index
    %c0_10 = arith.constant 0 : index
    %25 = vector.load %arg4[%c0_9, %c0_10] : memref<256x128xbf16, #tpu.memory_space<vmem>>, vector<256x128xbf16>
    tpu.vector_store %arg4[%c0_9, %c0_10], %24 {strides = array<i32>} : memref<256x128xbf16, #tpu.memory_space<vmem>>, vector<256x128xbf16>,
    return
  }
  func.func @transform_0(%arg0: i32) -> (i32, i32) {
    %c0_i32 = arith.constant 0 : i32
    %c0_i32_0 = arith.constant 0 : i32
    return %arg0, %c0_i32 : i32, i32
  }
  func.func @transform_1(%arg0: i32) -> (i32, i32) {
    %c0_i32 = arith.constant 0 : i32
    %c0_i32_0 = arith.constant 0 : i32
    %c0_i32_1 = arith.constant 0 : i32
    return %c0_i32, %c0_i32_0 : i32, i32
  }
  func.func @transform_2(%arg0: i32) -> (i32, i32) {
    %c0_i32 = arith.constant 0 : i32
    %c0_i32_0 = arith.constant 0 : i32
    %c0_i32_1 = arith.constant 0 : i32
    return %c0_i32, %c0_i32_0 : i32, i32
  }
  func.func @transform_3(%arg0: i32) -> (i32, i32) {
    %c0_i32 = arith.constant 0 : i32
    %c0_i32_0 = arith.constant 0 : i32
    return %arg0, %c0_i32 : i32, i32
  }
}

</mosaic_0001>

<llo_original>
// kernel: tpu_custom_call.1
$region0: #{tpu_custom_call.1}
  #allocation0 [shape = 'u32[]', space=smem, size = 0x4, offset = 0x4, fixed_abs, tag = 'smem constant byte address 0x4 - core index']
  #allocation1 [shape = 'u32[144,128]{1,0:T(1,128)}', space=vmem, size = 0x12000, scoped, tag = 'internal scratch']
  %s0 = inlined_call_operand.vmem [shape: f32[512,32], index: 0, kind: input, shape index: {}]
  %s1 = inlined_call_operand.vmem [shape: f32[32,128], index: 1, kind: input, shape index: {}]
  %s2 = inlined_call_operand.vmem [shape: f32[1,128], index: 2, kind: input, shape index: {}]
  %s3 = inlined_call_operand.hbm [shape: bf16[512,128], index: 3, kind: output, shape index: {}]
  %s4 = sld [smem:[#allocation0]]
  $region45: #{tpu_custom_call.1} parent=0
    _
  %s6 = ssub.s32 1, %s4
  %s7 = scalar_select 0, %s6, %s4
  $region1: #{tpu_custom_call.1} parent=0
    #allocation2 [shape = 'u8[131072]{0}', space=vmem, size = 0x20000, scoped, tag = 'output window, operand 0']
    #allocation3 [shape = 's32[2]{0}', space=sflag, size = 0x8, scoped, tag = 'scoped memory for tpu_custom_call.1']
    %8 = vsyncpa [#allocation3], 0
    %s9 = scalar_lea.sflag [#allocation3], 1
    %10 = vsyncpa %s9, 0
    loop: start=0, step=1, limit=4
    $region2: #{tpu_custom_call.1} parent=1 // loop_pre_header
      _
    $region3: #{tpu_custom_call.1} parent=1 // loop_header
      %s12 = sphi 0, %s16
      %p13 = scmp.ge.s32.totalorder %s12, 4
      %s22 = sphi 0, %s24
      %s25 = sphi 0, %s22
      %s26 = sphi 0, %s25
      %s42 = sphi 0, %s26
      %s46 = sphi 0, %s46
      %s48 = sphi 0, %s46
      %s49 = sphi 0, %s48
      %s63 = sphi 0, %s49
      %s67 = sphi 0, %s67
      %s69 = sphi 0, %s67
      %s70 = sphi 0, %s69
      %s84 = sphi 0, %s70
      %s90 = sphi 0, %s92
      %s93 = sphi 0, %s90
      %s94 = sphi 0, %s93
      %s110 = sphi 0, %s94
    $region4: #{tpu_custom_call.1} parent=1 // loop_header_branch
      %15 = sbr.rel (%p13) target = $region8
    $region5: #{tpu_custom_call.1} parent=1 // loop_body
      %s17 = ssub.s32 %s12, 1
      %s18 = ssub.s32 %s12, 2
      %s19 = sadd.s32 %s12, 1
      %s20 = ssub.s32 %s12, %s19
      %p21 = scmp.eq.s32.totalorder %s20, 0
      %s23 = sadd.s32 %s22, 1
      %s24 = scalar_select %p21, %s22, %s23
      %p27 = pneg %p21
      %p28 = scmp.eq.s32.totalorder %s12, 1
      %p29 = por %p27, %p28
      %p30 = scmp.ne.s32.totalorder %s22, %s25
      %p31 = scmp.eq.s32.totalorder %s12, 0
      %p32 = por %p30, %p31
      %p33 = scmp.ne.s32.totalorder %s22, %s25
      %p34 = scmp.eq.s32.totalorder %s17, 1
      %p35 = por %p33, %p34
      %p36 = scmp.ne.s32.totalorder %s25, %s26
      %p37 = scmp.eq.s32.totalorder %s17, 0
      %p38 = por %p36, %p37
      %p39 = scmp.ne.s32.totalorder %s25, %s26
      %p40 = scmp.eq.s32.totalorder %s18, 1
      %p41 = por %p39, %p40
      %p43 = scmp.ne.s32.totalorder %s26, %s42
      %p44 = scmp.eq.s32.totalorder %s18, 0
      %p45 = por %p43, %p44
      %s47 = sadd.s32 %s46, 1
      %p50 = scmp.eq.s32.totalorder %s12, 1
      %p51 = scmp.ne.s32.totalorder %s46, %s48
      %p52 = scmp.eq.s32.totalorder %s12, 0
      %p53 = por %p51, %p52
      %p54 = scmp.ne.s32.totalorder %s46, %s48
      %p55 = scmp.eq.s32.totalorder %s17, 1
      %p56 = por %p54, %p55
      %p57 = scmp.ne.s32.totalorder %s48, %s49
      %p58 = scmp.eq.s32.totalorder %s17, 0
      %p59 = por %p57, %p58
      %p60 = scmp.ne.s32.totalorder %s48, %s49
      %p61 = scmp.eq.s32.totalorder %s18, 1
      %p62 = por %p60, %p61
      %p64 = scmp.ne.s32.totalorder %s49, %s63
      %p65 = scmp.eq.s32.totalorder %s18, 0
      %p66 = por %p64, %p65
      %s68 = sadd.s32 %s67, 1
      %p71 = scmp.eq.s32.totalorder %s12, 1
      %p72 = scmp.ne.s32.totalorder %s67, %s69
      %p73 = scmp.eq.s32.totalorder %s12, 0
      %p74 = por %p72, %p73
      %p75 = scmp.ne.s32.totalorder %s67, %s69
      %p76 = scmp.eq.s32.totalorder %s17, 1
      %p77 = por %p75, %p76
      %p78 = scmp.ne.s32.totalorder %s69, %s70
      %p79 = scmp.eq.s32.totalorder %s17, 0
      %p80 = por %p78, %p79
      %p81 = scmp.ne.s32.totalorder %s69, %s70
      %p82 = scmp.eq.s32.totalorder %s18, 1
      %p83 = por %p81, %p82
      %p85 = scmp.ne.s32.totalorder %s70, %s84
      %p86 = scmp.eq.s32.totalorder %s18, 0
      %p87 = por %p85, %p86
      %s88 = ssub.s32 %s12, %s19
      %p89 = scmp.eq.s32.totalorder %s88, 0
      %s91 = sadd.s32 %s90, 1
      %s92 = scalar_select %p89, %s90, %s91
      %p95 = pneg %p89
      %p96 = scmp.eq.s32.totalorder %s12, 1
      %p97 = por %p95, %p96
      %p98 = scmp.ne.s32.totalorder %s90, %s93
      %p99 = scmp.eq.s32.totalorder %s12, 0
      %p100 = por %p98, %p99
      %p101 = scmp.ne.s32.totalorder %s90, %s93
      %p102 = scmp.eq.s32.totalorder %s17, 1
      %p103 = por %p101, %p102
      %p104 = scmp.ne.s32.totalorder %s93, %s94
      %p105 = scmp.eq.s32.totalorder %s17, 0
      %p106 = por %p104, %p105
      %p107 = scmp.ne.s32.totalorder %s93, %s94
      %p108 = scmp.eq.s32.totalorder %s18, 1
      %p109 = por %p107, %p108
      %p111 = scmp.ne.s32.totalorder %s94, %s110
      %p112 = scmp.eq.s32.totalorder %s18, 0
      %p113 = por %p111, %p112
      %p114 = scmp.le.s32.totalorder 1, %s12
      %p115 = scmp.lt.s32.totalorder %s12, 3
      %p116 = pnand %p114, %p115
      %p117 = pneg %p116
      // Predicated region
      $region9: #{tpu_custom_call.1} parent=5 // pred_check
        _
      $region10: #{tpu_custom_call.1} parent=5 // pred_check_branch
        %119 = sbr.rel (%p116) target = $region12
      $region11: #{tpu_custom_call.1} parent=5 // pred_region
        %s120 = ssub.s32 %s12, 1
        // Predicated region
        $region13: #{tpu_custom_call.1} parent=11 // pred_check
          %p121 = pneg %p59
        $region14: #{tpu_custom_call.1} parent=11 // pred_check_branch
          %123 = sbr.rel (%p121) target = $region16
        $region15: #{tpu_custom_call.1} parent=11 // pred_region
          _
        $region16: #{tpu_custom_call.1} parent=11 // pred_fallthru
          _
        // Predicated region
        $region17: #{tpu_custom_call.1} parent=11 // pred_check
          %p124 = pneg %p80
        $region18: #{tpu_custom_call.1} parent=11 // pred_check_branch
          %126 = sbr.rel (%p124) target = $region20
        $region19: #{tpu_custom_call.1} parent=11 // pred_region
          _
        $region20: #{tpu_custom_call.1} parent=11 // pred_fallthru
          _
      $region12: #{tpu_custom_call.1} parent=5 // pred_fallthru
        _
      %p127 = scmp.lt.s32.totalorder %s12, 2
      // Predicated region
      $region21: #{tpu_custom_call.1} parent=5 // pred_check
        %p128 = pneg %p127
      $region22: #{tpu_custom_call.1} parent=5 // pred_check_branch
        %130 = sbr.rel (%p128) target = $region24
      $region23: #{tpu_custom_call.1} parent=5 // pred_region
        // Predicated region
        $region25: #{tpu_custom_call.1} parent=23 // pred_check
          %p131 = pneg %p32
        $region26: #{tpu_custom_call.1} parent=23 // pred_check_branch
          %133 = sbr.rel (%p131) target = $region28
        $region27: #{tpu_custom_call.1} parent=23 // pred_region
          %s134 = smul.u32 32, %s12
          %p135 = scmp.lt.s32.totalorder %s134, 63
          %s136 = scalar_select %p135, %s134, 63
          %s137 = smul.addr %s136, 8
          %s138 = scalar_lea.vmem %s0, %s137
          %s139 = smul.u32 32, %s12
        $region28: #{tpu_custom_call.1} parent=23 // pred_fallthru
          _
      $region24: #{tpu_custom_call.1} parent=5 // pred_fallthru
        _
      %p140 = scmp.le.s32.totalorder 1, %s12
      %p141 = scmp.lt.s32.totalorder %s12, 3
      %p142 = pnand %p140, %p141
      %p143 = pneg %p142
      // Predicated region
      $region29: #{tpu_custom_call.1} parent=5 // pred_check
        _
      $region30: #{tpu_custom_call.1} parent=5 // pred_check_branch
        %145 = sbr.rel (%p142) target = $region32
      $region31: #{tpu_custom_call.1} parent=5 // pred_region
        %s146 = ssub.s32 %s12, 1
        %s147 = smul.u32 32, %s17
        %p148 = scmp.lt.s32.totalorder %s147, 63
        %s149 = scalar_select %p148, %s147, 63
        %s150 = smul.addr %s149, 8
        %s151 = scalar_lea.vmem %s0, %s150
        %p152 = pneg %p38
        %p153 = pneg %p35
        %p154 = pneg %p59
        %p155 = pneg %p56
        %p156 = pneg %p80
        %p157 = pneg %p77
        %p158 = pneg %p106
        %p159 = pneg %p103
        %s160 = sand.u32 %s93, 1
        %s161 = scalar_lea.sflag [#allocation3], %s160
        %s162 = sand.u32 %s93, 1
        %s163 = smul.addr %s162, 128
        %s164 = scalar_lea.vmem [#allocation2], %s163
        %s165 = smul.u32 32, %s17
        %p166 = scmp.lt.s32.totalorder %s165, 63
        %s167 = scalar_select %p166, %s165, 63
        %s168 = smul.addr %s167, 8
        %s169 = scalar_lea.vmem %s0, %s168
        %s170 = smul.u32 32, %s17
        %s171 = smul.u32 32, %s17
        %v172 = vld [vmem:[%s169] sm:$0xff]
        %v173 = vld [vmem:[%s169 + $0x8] sm:$0xff]
        %v174 = vld [vmem:[%s169 + $0x10] sm:$0xff]
        %v175 = vld [vmem:[%s169 + $0x18] sm:$0xff]
        %v176 = vld [vmem:[%s169 + $0x20] sm:$0xff]
        %v177 = vld [vmem:[%s169 + $0x28] sm:$0xff]
        %v178 = vld [vmem:[%s169 + $0x30] sm:$0xff]
        %v179 = vld [vmem:[%s169 + $0x38] sm:$0xff]
        %v180 = vld [vmem:[%s169 + $0x40] sm:$0xff]
        %v181 = vld [vmem:[%s169 + $0x48] sm:$0xff]
        %v182 = vld [vmem:[%s169 + $0x50] sm:$0xff]
        %v183 = vld [vmem:[%s169 + $0x58] sm:$0xff]
        %v184 = vld [vmem:[%s169 + $0x60] sm:$0xff]
        %v185 = vld [vmem:[%s169 + $0x68] sm:$0xff]
        %v186 = vld [vmem:[%s169 + $0x70] sm:$0xff]
        %v187 = vld [vmem:[%s169 + $0x78] sm:$0xff]
        %v188 = vld [vmem:[%s169 + $0x80] sm:$0xff]
        %v189 = vld [vmem:[%s169 + $0x88] sm:$0xff]
        %v190 = vld [vmem:[%s169 + $0x90] sm:$0xff]
        %v191 = vld [vmem:[%s169 + $0x98] sm:$0xff]
        %v192 = vld [vmem:[%s169 + $0xa0] sm:$0xff]
        %v193 = vld [vmem:[%s169 + $0xa8] sm:$0xff]
        %v194 = vld [vmem:[%s169 + $0xb0] sm:$0xff]
        %v195 = vld [vmem:[%s169 + $0xb8] sm:$0xff]
        %v196 = vld [vmem:[%s169 + $0xc0] sm:$0xff]
        %v197 = vld [vmem:[%s169 + $0xc8] sm:$0xff]
        %v198 = vld [vmem:[%s169 + $0xd0] sm:$0xff]
        %v199 = vld [vmem:[%s169 + $0xd8] sm:$0xff]
        %v200 = vld [vmem:[%s169 + $0xe0] sm:$0xff]
        %v201 = vld [vmem:[%s169 + $0xe8] sm:$0xff]
        %v202 = vld [vmem:[%s169 + $0xf0] sm:$0xff]
        %v203 = vld [vmem:[%s169 + $0xf8] sm:$0xff]
        %v204 = vld [vmem:[%s1] sm:$0xff]
        %v205 = vld [vmem:[%s1 + $0x8] sm:$0xff]
        %v206 = vld [vmem:[%s1 + $0x10] sm:$0xff]
        %v207 = vld [vmem:[%s1 + $0x18] sm:$0xff]
        %vm208 = vcmask 261120
        %v210 = vsel %vm208, %v172, 0
        %v213 = vsel %vm208, %v173, 0
        %v216 = vsel %vm208, %v174, 0
        %v219 = vsel %vm208, %v175, 0
        %v222 = vsel %vm208, %v176, 0
        %v225 = vsel %vm208, %v177, 0
        %v228 = vsel %vm208, %v178, 0
        %v231 = vsel %vm208, %v179, 0
        %v234 = vsel %vm208, %v180, 0
        %v237 = vsel %vm208, %v181, 0
        %v240 = vsel %vm208, %v182, 0
        %v243 = vsel %vm208, %v183, 0
        %v246 = vsel %vm208, %v184, 0
        %v249 = vsel %vm208, %v185, 0
        %v252 = vsel %vm208, %v186, 0
        %v255 = vsel %vm208, %v187, 0
        %v258 = vsel %vm208, %v188, 0
        %v261 = vsel %vm208, %v189, 0
        %v264 = vsel %vm208, %v190, 0
        %v267 = vsel %vm208, %v191, 0
        %v270 = vsel %vm208, %v192, 0
        %v273 = vsel %vm208, %v193, 0
        %v276 = vsel %vm208, %v194, 0
        %v279 = vsel %vm208, %v195, 0
        %v282 = vsel %vm208, %v196, 0
        %v285 = vsel %vm208, %v197, 0
        %v288 = vsel %vm208, %v198, 0
        %v291 = vsel %vm208, %v199, 0
        %v294 = vsel %vm208, %v200, 0
        %v297 = vsel %vm208, %v201, 0
        %v300 = vsel %vm208, %v202, 0
        %v303 = vsel %vm208, %v203, 0
        %305 = vmatprep.subr.mxu0 0.0
        %306 = vmatpush1.msra.mxu0 %v204
        %307 = vmatprep.subr.mxu0 0.0
        %308 = vmatpush1.msra.mxu0 %v205
        %309 = vmatprep.subr.mxu0 0.0
        %310 = vmatpush1.msra.mxu0 %v206
        %311 = vmatprep.subr.mxu0 0.0
        %312 = vmatpush1.msra.mxu0 %v207
        %313 = vmatprep.subr.mxu0 0.0
        %314 = vmatpush1.msra.mxu0 0.0
        %315 = vmatprep.subr.mxu0 0.0
        %316 = vmatpush1.msra.mxu0 0.0
        %317 = vmatprep.subr.mxu0 0.0
        %318 = vmatpush1.msra.mxu0 0.0
        %319 = vmatprep.subr.mxu0 0.0
        %320 = vmatpush1.msra.mxu0 0.0
        %321 = vmatprep.subr.mxu0 0.0
        %322 = vmatpush1.msra.mxu0 0.0
        %323 = vmatprep.subr.mxu0 0.0
        %324 = vmatpush1.msra.mxu0 0.0
        %325 = vmatprep.subr.mxu0 0.0
        %326 = vmatpush1.msra.mxu0 0.0
        %327 = vmatprep.subr.mxu0 0.0
        %328 = vmatpush1.msra.mxu0 0.0
        %329 = vmatprep.subr.mxu0 0.0
        %330 = vmatpush1.msra.mxu0 0.0
        %331 = vmatprep.subr.mxu0 0.0
        %332 = vmatpush1.msra.mxu0 0.0
        %333 = vmatprep.subr.mxu0 0.0
        %334 = vmatpush1.msra.mxu0 0.0
        %335 = vmatprep.subr.mxu0 0.0
        %336 = vmatpush1.msra.mxu0 0.0
        %337 = vmatprep.subr.mxu0 0.0
        %338 = vmatpush1.msra.mxu0 0.0
        %339 = vmatprep.subr.mxu0 0.0
        %340 = vmatpush1.msra.mxu0 0.0
        %341 = vmatprep.subr.mxu0 0.0
        %342 = vmatpush1.msra.mxu0 0.0
        %343 = vmatprep.subr.mxu0 0.0
        %344 = vmatpush1.msra.mxu0 0.0
        %345 = vmatprep.subr.mxu0 0.0
        %346 = vmatpush1.msra.mxu0 0.0
        %347 = vmatprep.subr.mxu0 0.0
        %348 = vmatpush1.msra.mxu0 0.0
        %349 = vmatprep.subr.mxu0 0.0
        %350 = vmatpush1.msra.mxu0 0.0
        %351 = vmatprep.subr.mxu0 0.0
        %352 = vmatpush1.msra.mxu0 0.0
        %353 = vmatprep.subr.mxu0 0.0
        %354 = vmatpush1.msra.mxu0 0.0
        %355 = vmatprep.subr.mxu0 0.0
        %356 = vmatpush1.msra.mxu0 0.0
        %357 = vmatprep.subr.mxu0 0.0
        %358 = vmatpush1.msra.mxu0 0.0
        %359 = vmatprep.subr.mxu0 0.0
        %360 = vmatpush1.msra.mxu0 0.0
        %361 = vmatprep.subr.mxu0 0.0
        %362 = vmatpush1.msra.mxu0 0.0
        %363 = vmatprep.subr.mxu0 0.0
        %364 = vmatpush1.msra.mxu0 0.0
        %365 = vmatprep.subr.mxu0 0.0
        %366 = vmatpush1.msra.mxu0 0.0
        %367 = vmatprep.subr.mxu0 0.0
        %368 = vmatpush1.msra.mxu0 0.0
        %369 = vmatprep.mubr.f32.mxu0 0.0
        %370 = vmatmul.mubr.f32.gmra.mrb[0].mxu0 %v210
        %v371 = vpop.f32.mrb[0].mxu0
        %v372 = vadd.f32 0.0, %v371
        %v373 = vpop.f32.mrb[0].mxu0
        %374 = vmatprep.mubr.f32.mxu0 0.0
        %375 = vmatmul.mubr.f32.gmra.mrb[0].mxu0 %v213
        %v376 = vpop.f32.mrb[0].mxu0
        %v377 = vadd.f32 0.0, %v376
        %v378 = vpop.f32.mrb[0].mxu0
        %379 = vmatprep.mubr.f32.mxu0 0.0
        %380 = vmatmul.mubr.f32.gmra.mrb[0].mxu0 %v216
        %v381 = vpop.f32.mrb[0].mxu0
        %v382 = vadd.f32 0.0, %v381
        %v383 = vpop.f32.mrb[0].mxu0
        %384 = vmatprep.mubr.f32.mxu0 0.0
        %385 = vmatmul.mubr.f32.gmra.mrb[0].mxu0 %v219
        %v386 = vpop.f32.mrb[0].mxu0
        %v387 = vadd.f32 0.0, %v386
        %v388 = vpop.f32.mrb[0].mxu0
        %389 = vmatprep.mubr.f32.mxu0 0.0
        %390 = vmatmul.mubr.f32.gmra.mrb[0].mxu0 %v222
        %v391 = vpop.f32.mrb[0].mxu0
        %v392 = vadd.f32 0.0, %v391
        %v393 = vpop.f32.mrb[0].mxu0
        %394 = vmatprep.mubr.f32.mxu0 0.0
        %395 = vmatmul.mubr.f32.gmra.mrb[0].mxu0 %v225
        %v396 = vpop.f32.mrb[0].mxu0
        %v397 = vadd.f32 0.0, %v396
        %v398 = vpop.f32.mrb[0].mxu0
        %399 = vmatprep.mubr.f32.mxu0 0.0
        %400 = vmatmul.mubr.f32.gmra.mrb[0].mxu0 %v228
        %v401 = vpop.f32.mrb[0].mxu0
        %v402 = vadd.f32 0.0, %v401
        %v403 = vpop.f32.mrb[0].mxu0
        %404 = vmatprep.mubr.f32.mxu0 0.0
        %405 = vmatmul.mubr.f32.gmra.mrb[0].mxu0 %v231
        %v406 = vpop.f32.mrb[0].mxu0
        %v407 = vadd.f32 0.0, %v406
        %v408 = vpop.f32.mrb[0].mxu0
        %409 = vmatprep.mubr.f32.mxu0 0.0
        %410 = vmatmul.mubr.f32.gmra.mrb[0].mxu0 %v234
        %v411 = vpop.f32.mrb[0].mxu0
        %v412 = vadd.f32 0.0, %v411
        %v413 = vpop.f32.mrb[0].mxu0
        %414 = vmatprep.mubr.f32.mxu0 0.0
        %415 = vmatmul.mubr.f32.gmra.mrb[0].mxu0 %v237
        %v416 = vpop.f32.mrb[0].mxu0
        %v417 = vadd.f32 0.0, %v416
        %v418 = vpop.f32.mrb[0].mxu0
        %419 = vmatprep.mubr.f32.mxu0 0.0
        %420 = vmatmul.mubr.f32.gmra.mrb[0].mxu0 %v240
        %v421 = vpop.f32.mrb[0].mxu0
        %v422 = vadd.f32 0.0, %v421
        %v423 = vpop.f32.mrb[0].mxu0
        %424 = vmatprep.mubr.f32.mxu0 0.0
        %425 = vmatmul.mubr.f32.gmra.mrb[0].mxu0 %v243
        %v426 = vpop.f32.mrb[0].mxu0
        %v427 = vadd.f32 0.0, %v426
        %v428 = vpop.f32.mrb[0].mxu0
        %429 = vmatprep.mubr.f32.mxu0 0.0
        %430 = vmatmul.mubr.f32.gmra.mrb[0].mxu0 %v246
        %v431 = vpop.f32.mrb[0].mxu0
        %v432 = vadd.f32 0.0, %v431
        %v433 = vpop.f32.mrb[0].mxu0
        %434 = vmatprep.mubr.f32.mxu0 0.0
        %435 = vmatmul.mubr.f32.gmra.mrb[0].mxu0 %v249
        %v436 = vpop.f32.mrb[0].mxu0
        %v437 = vadd.f32 0.0, %v436
        %v438 = vpop.f32.mrb[0].mxu0
        %439 = vmatprep.mubr.f32.mxu0 0.0
        %440 = vmatmul.mubr.f32.gmra.mrb[0].mxu0 %v252
        %v441 = vpop.f32.mrb[0].mxu0
        %v442 = vadd.f32 0.0, %v441
        %v443 = vpop.f32.mrb[0].mxu0
        %444 = vmatprep.mubr.f32.mxu0 0.0
        %445 = vmatmul.mubr.f32.gmra.mrb[0].mxu0 %v255
        %v446 = vpop.f32.mrb[0].mxu0
        %v447 = vadd.f32 0.0, %v446
        %v448 = vpop.f32.mrb[0].mxu0
        %449 = vmatprep.mubr.f32.mxu0 0.0
        %450 = vmatmul.mubr.f32.gmra.mrb[0].mxu0 %v258
        %v451 = vpop.f32.mrb[0].mxu0
        %v452 = vadd.f32 0.0, %v451
        %v453 = vpop.f32.mrb[0].mxu0
        %454 = vmatprep.mubr.f32.mxu0 0.0
        %455 = vmatmul.mubr.f32.gmra.mrb[0].mxu0 %v261
        %v456 = vpop.f32.mrb[0].mxu0
        %v457 = vadd.f32 0.0, %v456
        %v458 = vpop.f32.mrb[0].mxu0
        %459 = vmatprep.mubr.f32.mxu0 0.0
        %460 = vmatmul.mubr.f32.gmra.mrb[0].mxu0 %v264
        %v461 = vpop.f32.mrb[0].mxu0
        %v462 = vadd.f32 0.0, %v461
        %v463 = vpop.f32.mrb[0].mxu0
        %464 = vmatprep.mubr.f32.mxu0 0.0
        %465 = vmatmul.mubr.f32.gmra.mrb[0].mxu0 %v267
        %v466 = vpop.f32.mrb[0].mxu0
        %v467 = vadd.f32 0.0, %v466
        %v468 = vpop.f32.mrb[0].mxu0
        %469 = vmatprep.mubr.f32.mxu0 0.0
        %470 = vmatmul.mubr.f32.gmra.mrb[0].mxu0 %v270
        %v471 = vpop.f32.mrb[0].mxu0
        %v472 = vadd.f32 0.0, %v471
        %v473 = vpop.f32.mrb[0].mxu0
        %474 = vmatprep.mubr.f32.mxu0 0.0
        %475 = vmatmul.mubr.f32.gmra.mrb[0].mxu0 %v273
        %v476 = vpop.f32.mrb[0].mxu0
        %v477 = vadd.f32 0.0, %v476
        %v478 = vpop.f32.mrb[0].mxu0
        %479 = vmatprep.mubr.f32.mxu0 0.0
        %480 = vmatmul.mubr.f32.gmra.mrb[0].mxu0 %v276
        %v481 = vpop.f32.mrb[0].mxu0
        %v482 = vadd.f32 0.0, %v481
        %v483 = vpop.f32.mrb[0].mxu0
        %484 = vmatprep.mubr.f32.mxu0 0.0
        %485 = vmatmul.mubr.f32.gmra.mrb[0].mxu0 %v279
        %v486 = vpop.f32.mrb[0].mxu0
        %v487 = vadd.f32 0.0, %v486
        %v488 = vpop.f32.mrb[0].mxu0
        %489 = vmatprep.mubr.f32.mxu0 0.0
        %490 = vmatmul.mubr.f32.gmra.mrb[0].mxu0 %v282
        %v491 = vpop.f32.mrb[0].mxu0
        %v492 = vadd.f32 0.0, %v491
        %v493 = vpop.f32.mrb[0].mxu0
        %494 = vmatprep.mubr.f32.mxu0 0.0
        %495 = vmatmul.mubr.f32.gmra.mrb[0].mxu0 %v285
        %v496 = vpop.f32.mrb[0].mxu0
        %v497 = vadd.f32 0.0, %v496
        %v498 = vpop.f32.mrb[0].mxu0
        %499 = vmatprep.mubr.f32.mxu0 0.0
        %500 = vmatmul.mubr.f32.gmra.mrb[0].mxu0 %v288
        %v501 = vpop.f32.mrb[0].mxu0
        %v502 = vadd.f32 0.0, %v501
        %v503 = vpop.f32.mrb[0].mxu0
        %504 = vmatprep.mubr.f32.mxu0 0.0
        %505 = vmatmul.mubr.f32.gmra.mrb[0].mxu0 %v291
        %v506 = vpop.f32.mrb[0].mxu0
        %v507 = vadd.f32 0.0, %v506
        %v508 = vpop.f32.mrb[0].mxu0
        %509 = vmatprep.mubr.f32.mxu0 0.0
        %510 = vmatmul.mubr.f32.gmra.mrb[0].mxu0 %v294
        %v511 = vpop.f32.mrb[0].mxu0
        %v512 = vadd.f32 0.0, %v511
        %v513 = vpop.f32.mrb[0].mxu0
        %514 = vmatprep.mubr.f32.mxu0 0.0
        %515 = vmatmul.mubr.f32.gmra.mrb[0].mxu0 %v297
        %v516 = vpop.f32.mrb[0].mxu0
        %v517 = vadd.f32 0.0, %v516
        %v518 = vpop.f32.mrb[0].mxu0
        %519 = vmatprep.mubr.f32.mxu0 0.0
        %520 = vmatmul.mubr.f32.gmra.mrb[0].mxu0 %v300
        %v521 = vpop.f32.mrb[0].mxu0
        %v522 = vadd.f32 0.0, %v521
        %v523 = vpop.f32.mrb[0].mxu0
        %524 = vmatprep.mubr.f32.mxu0 0.0
        %525 = vmatmul.mubr.f32.gmra.mrb[0].mxu0 %v303
        %v526 = vpop.f32.mrb[0].mxu0
        %v527 = vadd.f32 0.0, %v526
        %v528 = vpop.f32.mrb[0].mxu0
        %529 = vdwg.mxu0
        %v530 = vld [vmem:[%s2] sm:$0x1]
        %v532 = vlaneseq
        %v533 = vshrl.u32 %v532, 7
        %v534 = vsub.s32 0, %v533
        %v535 = vrot.slane %v530, %v534
        %v537 = vmul.f32 %v372, %v535
        %v538 = vmul.f32 %v377, %v535
        %v539 = vmul.f32 %v382, %v535
        %v540 = vmul.f32 %v387, %v535
        %v541 = vmul.f32 %v392, %v535
        %v542 = vmul.f32 %v397, %v535
        %v543 = vmul.f32 %v402, %v535
        %v544 = vmul.f32 %v407, %v535
        %v545 = vmul.f32 %v412, %v535
        %v546 = vmul.f32 %v417, %v535
        %v547 = vmul.f32 %v422, %v535
        %v548 = vmul.f32 %v427, %v535
        %v549 = vmul.f32 %v432, %v535
        %v550 = vmul.f32 %v437, %v535
        %v551 = vmul.f32 %v442, %v535
        %v552 = vmul.f32 %v447, %v535
        %v553 = vmul.f32 %v452, %v535
        %v554 = vmul.f32 %v457, %v535
        %v555 = vmul.f32 %v462, %v535
        %v556 = vmul.f32 %v467, %v535
        %v557 = vmul.f32 %v472, %v535
        %v558 = vmul.f32 %v477, %v535
        %v559 = vmul.f32 %v482, %v535
        %v560 = vmul.f32 %v487, %v535
        %v561 = vmul.f32 %v492, %v535
        %v562 = vmul.f32 %v497, %v535
        %v563 = vmul.f32 %v502, %v535
        %v564 = vmul.f32 %v507, %v535
        %v565 = vmul.f32 %v512, %v535
        %v566 = vmul.f32 %v517, %v535
        %v567 = vmul.f32 %v522, %v535
        %v568 = vmul.f32 %v527, %v535
        %569 = vadd.xlane.f32.xlu0 %v537
        %v570 = vpop.xlane.xlu0 %569
        %571 = vadd.xlane.f32.xlu0 %v538
        %v572 = vpop.xlane.xlu0 %571
        %573 = vadd.xlane.f32.xlu0 %v539
        %v574 = vpop.xlane.xlu0 %573
        %575 = vadd.xlane.f32.xlu0 %v540
        %v576 = vpop.xlane.xlu0 %575
        %577 = vadd.xlane.f32.xlu0 %v541
        %v578 = vpop.xlane.xlu0 %577
        %579 = vadd.xlane.f32.xlu0 %v542
        %v580 = vpop.xlane.xlu0 %579
        %581 = vadd.xlane.f32.xlu0 %v543
        %v582 = vpop.xlane.xlu0 %581
        %583 = vadd.xlane.f32.xlu0 %v544
        %v584 = vpop.xlane.xlu0 %583
        %585 = vadd.xlane.f32.xlu0 %v545
        %v586 = vpop.xlane.xlu0 %585
        %587 = vadd.xlane.f32.xlu0 %v546
        %v588 = vpop.xlane.xlu0 %587
        %589 = vadd.xlane.f32.xlu0 %v547
        %v590 = vpop.xlane.xlu0 %589
        %591 = vadd.xlane.f32.xlu0 %v548
        %v592 = vpop.xlane.xlu0 %591
        %593 = vadd.xlane.f32.xlu0 %v549
        %v594 = vpop.xlane.xlu0 %593
        %595 = vadd.xlane.f32.xlu0 %v550
        %v596 = vpop.xlane.xlu0 %595
        %597 = vadd.xlane.f32.xlu0 %v551
        %v598 = vpop.xlane.xlu0 %597
        %599 = vadd.xlane.f32.xlu0 %v552
        %v600 = vpop.xlane.xlu0 %599
        %601 = vadd.xlane.f32.xlu0 %v553
        %v602 = vpop.xlane.xlu0 %601
        %603 = vadd.xlane.f32.xlu0 %v554
        %v604 = vpop.xlane.xlu0 %603
        %605 = vadd.xlane.f32.xlu0 %v555
        %v606 = vpop.xlane.xlu0 %605
        %607 = vadd.xlane.f32.xlu0 %v556
        %v608 = vpop.xlane.xlu0 %607
        %609 = vadd.xlane.f32.xlu0 %v557
        %v610 = vpop.xlane.xlu0 %609
        %611 = vadd.xlane.f32.xlu0 %v558
        %v612 = vpop.xlane.xlu0 %611
        %613 = vadd.xlane.f32.xlu0 %v559
        %v614 = vpop.xlane.xlu0 %613
        %615 = vadd.xlane.f32.xlu0 %v560
        %v616 = vpop.xlane.xlu0 %615
        %617 = vadd.xlane.f32.xlu0 %v561
        %v618 = vpop.xlane.xlu0 %617
        %619 = vadd.xlane.f32.xlu0 %v562
        %v620 = vpop.xlane.xlu0 %619
        %621 = vadd.xlane.f32.xlu0 %v563
        %v622 = vpop.xlane.xlu0 %621
        %623 = vadd.xlane.f32.xlu0 %v564
        %v624 = vpop.xlane.xlu0 %623
        %625 = vadd.xlane.f32.xlu0 %v565
        %v626 = vpop.xlane.xlu0 %625
        %627 = vadd.xlane.f32.xlu0 %v566
        %v628 = vpop.xlane.xlu0 %627
        %629 = vadd.xlane.f32.xlu0 %v567
        %v630 = vpop.xlane.xlu0 %629
        %631 = vadd.xlane.f32.xlu0 %v568
        %v632 = vpop.xlane.xlu0 %631
        %vm633 = vcmp.gt.f32.partialorder %v570, 0.0
        %vm634 = vcmp.gt.f32.partialorder %v572, 0.0
        %vm635 = vcmp.gt.f32.partialorder %v574, 0.0
        %vm636 = vcmp.gt.f32.partialorder %v576, 0.0
        %vm637 = vcmp.gt.f32.partialorder %v578, 0.0
        %vm638 = vcmp.gt.f32.partialorder %v580, 0.0
        %vm639 = vcmp.gt.f32.partialorder %v582, 0.0
        %vm640 = vcmp.gt.f32.partialorder %v584, 0.0
        %vm641 = vcmp.gt.f32.partialorder %v586, 0.0
        %vm642 = vcmp.gt.f32.partialorder %v588, 0.0
        %vm643 = vcmp.gt.f32.partialorder %v590, 0.0
        %vm644 = vcmp.gt.f32.partialorder %v592, 0.0
        %vm645 = vcmp.gt.f32.partialorder %v594, 0.0
        %vm646 = vcmp.gt.f32.partialorder %v596, 0.0
        %vm647 = vcmp.gt.f32.partialorder %v598, 0.0
        %vm648 = vcmp.gt.f32.partialorder %v600, 0.0
        %vm649 = vcmp.gt.f32.partialorder %v602, 0.0
        %vm650 = vcmp.gt.f32.partialorder %v604, 0.0
        %vm651 = vcmp.gt.f32.partialorder %v606, 0.0
        %vm652 = vcmp.gt.f32.partialorder %v608, 0.0
        %vm653 = vcmp.gt.f32.partialorder %v610, 0.0
        %vm654 = vcmp.gt.f32.partialorder %v612, 0.0
        %vm655 = vcmp.gt.f32.partialorder %v614, 0.0
        %vm656 = vcmp.gt.f32.partialorder %v616, 0.0
        %vm657 = vcmp.gt.f32.partialorder %v618, 0.0
        %vm658 = vcmp.gt.f32.partialorder %v620, 0.0
        %vm659 = vcmp.gt.f32.partialorder %v622, 0.0
        %vm660 = vcmp.gt.f32.partialorder %v624, 0.0
        %vm661 = vcmp.gt.f32.partialorder %v626, 0.0
        %vm662 = vcmp.gt.f32.partialorder %v628, 0.0
        %vm663 = vcmp.gt.f32.partialorder %v630, 0.0
        %vm664 = vcmp.gt.f32.partialorder %v632, 0.0
        %v665 = vmul.f32 %v570, 0.2
        %v666 = vmul.f32 %v572, 0.2
        %v667 = vmul.f32 %v574, 0.2
        %v668 = vmul.f32 %v576, 0.2
        %v669 = vmul.f32 %v578, 0.2
        %v670 = vmul.f32 %v580, 0.2
        %v671 = vmul.f32 %v582, 0.2
        %v672 = vmul.f32 %v584, 0.2
        %v673 = vmul.f32 %v586, 0.2
        %v674 = vmul.f32 %v588, 0.2
        %v675 = vmul.f32 %v590, 0.2
        %v676 = vmul.f32 %v592, 0.2
        %v677 = vmul.f32 %v594, 0.2
        %v678 = vmul.f32 %v596, 0.2
        %v679 = vmul.f32 %v598, 0.2
        %v680 = vmul.f32 %v600, 0.2
        %v681 = vmul.f32 %v602, 0.2
        %v682 = vmul.f32 %v604, 0.2
        %v683 = vmul.f32 %v606, 0.2
        %v684 = vmul.f32 %v608, 0.2
        %v685 = vmul.f32 %v610, 0.2
        %v686 = vmul.f32 %v612, 0.2
        %v687 = vmul.f32 %v614, 0.2
        %v688 = vmul.f32 %v616, 0.2
        %v689 = vmul.f32 %v618, 0.2
        %v690 = vmul.f32 %v620, 0.2
        %v691 = vmul.f32 %v622, 0.2
        %v692 = vmul.f32 %v624, 0.2
        %v693 = vmul.f32 %v626, 0.2
        %v694 = vmul.f32 %v628, 0.2
        %v695 = vmul.f32 %v630, 0.2
        %v696 = vmul.f32 %v632, 0.2
        %v697 = vsel %vm633, %v570, %v665
        %v698 = vsel %vm634, %v572, %v666
        %v699 = vsel %vm635, %v574, %v667
        %v700 = vsel %vm636, %v576, %v668
        %v701 = vsel %vm637, %v578, %v669
        %v702 = vsel %vm638, %v580, %v670
        %v703 = vsel %vm639, %v582, %v671
        %v704 = vsel %vm640, %v584, %v672
        %v705 = vsel %vm641, %v586, %v673
        %v706 = vsel %vm642, %v588, %v674
        %v707 = vsel %vm643, %v590, %v675
        %v708 = vsel %vm644, %v592, %v676
        %v709 = vsel %vm645, %v594, %v677
        %v710 = vsel %vm646, %v596, %v678
        %v711 = vsel %vm647, %v598, %v679
        %v712 = vsel %vm648, %v600, %v680
        %v713 = vsel %vm649, %v602, %v681
        %v714 = vsel %vm650, %v604, %v682
        %v715 = vsel %vm651, %v606, %v683
        %v716 = vsel %vm652, %v608, %v684
        %v717 = vsel %vm653, %v610, %v685
        %v718 = vsel %vm654, %v612, %v686
        %v719 = vsel %vm655, %v614, %v687
        %v720 = vsel %vm656, %v616, %v688
        %v721 = vsel %vm657, %v618, %v689
        %v722 = vsel %vm658, %v620, %v690
        %v723 = vsel %vm659, %v622, %v691
        %v724 = vsel %vm660, %v624, %v692
        %v725 = vsel %vm661, %v626, %v693
        %v726 = vsel %vm662, %v628, %v694
        %v727 = vsel %vm663, %v630, %v695
        %v728 = vsel %vm664, %v632, %v696
        %v729 = vsub.f32 0.0, %v697
        %v730 = vsub.f32 0.0, %v698
        %v731 = vsub.f32 0.0, %v699
        %v732 = vsub.f32 0.0, %v700
        %v733 = vsub.f32 0.0, %v701
        %v734 = vsub.f32 0.0, %v702
        %v735 = vsub.f32 0.0, %v703
        %v736 = vsub.f32 0.0, %v704
        %v737 = vsub.f32 0.0, %v705
        %v738 = vsub.f32 0.0, %v706
        %v739 = vsub.f32 0.0, %v707
        %v740 = vsub.f32 0.0, %v708
        %v741 = vsub.f32 0.0, %v709
        %v742 = vsub.f32 0.0, %v710
        %v743 = vsub.f32 0.0, %v711
        %v744 = vsub.f32 0.0, %v712
        %v745 = vsub.f32 0.0, %v713
        %v746 = vsub.f32 0.0, %v714
        %v747 = vsub.f32 0.0, %v715
        %v748 = vsub.f32 0.0, %v716
        %v749 = vsub.f32 0.0, %v717
        %v750 = vsub.f32 0.0, %v718
        %v751 = vsub.f32 0.0, %v719
        %v752 = vsub.f32 0.0, %v720
        %v753 = vsub.f32 0.0, %v721
        %v754 = vsub.f32 0.0, %v722
        %v755 = vsub.f32 0.0, %v723
        %v756 = vsub.f32 0.0, %v724
        %v757 = vsub.f32 0.0, %v725
        %v758 = vsub.f32 0.0, %v726
        %v759 = vsub.f32 0.0, %v727
        %v760 = vsub.f32 0.0, %v728
        %v761 = vmul.f32 %v729, 1.442695
        %v762 = vpow.pop %v761
        %v763 = vmul.f32 %v730, 1.442695
        %v764 = vpow.pop %v763
        %v765 = vmul.f32 %v731, 1.442695
        %v766 = vpow.pop %v765
        %v767 = vmul.f32 %v732, 1.442695
        %v768 = vpow.pop %v767
        %v769 = vmul.f32 %v733, 1.442695
        %v770 = vpow.pop %v769
        %v771 = vmul.f32 %v734, 1.442695
        %v772 = vpow.pop %v771
        %v773 = vmul.f32 %v735, 1.442695
        %v774 = vpow.pop %v773
        %v775 = vmul.f32 %v736, 1.442695
        %v776 = vpow.pop %v775
        %v777 = vmul.f32 %v737, 1.442695
        %v778 = vpow.pop %v777
        %v779 = vmul.f32 %v738, 1.442695
        %v780 = vpow.pop %v779
        %v781 = vmul.f32 %v739, 1.442695
        %v782 = vpow.pop %v781
        %v783 = vmul.f32 %v740, 1.442695
        %v784 = vpow.pop %v783
        %v785 = vmul.f32 %v741, 1.442695
        %v786 = vpow.pop %v785
        %v787 = vmul.f32 %v742, 1.442695
        %v788 = vpow.pop %v787
        %v789 = vmul.f32 %v743, 1.442695
        %v790 = vpow.pop %v789
        %v791 = vmul.f32 %v744, 1.442695
        %v792 = vpow.pop %v791
        %v793 = vmul.f32 %v745, 1.442695
        %v794 = vpow.pop %v793
        %v795 = vmul.f32 %v746, 1.442695
        %v796 = vpow.pop %v795
        %v797 = vmul.f32 %v747, 1.442695
        %v798 = vpow.pop %v797
        %v799 = vmul.f32 %v748, 1.442695
        %v800 = vpow.pop %v799
        %v801 = vmul.f32 %v749, 1.442695
        %v802 = vpow.pop %v801
        %v803 = vmul.f32 %v750, 1.442695
        %v804 = vpow.pop %v803
        %v805 = vmul.f32 %v751, 1.442695
        %v806 = vpow.pop %v805
        %v807 = vmul.f32 %v752, 1.442695
        %v808 = vpow.pop %v807
        %v809 = vmul.f32 %v753, 1.442695
        %v810 = vpow.pop %v809
        %v811 = vmul.f32 %v754, 1.442695
        %v812 = vpow.pop %v811
        %v813 = vmul.f32 %v755, 1.442695
        %v814 = vpow.pop %v813
        %v815 = vmul.f32 %v756, 1.442695
        %v816 = vpow.pop %v815
        %v817 = vmul.f32 %v757, 1.442695
        %v818 = vpow.pop %v817
        %v819 = vmul.f32 %v758, 1.442695
        %v820 = vpow.pop %v819
        %v821 = vmul.f32 %v759, 1.442695
        %v822 = vpow.pop %v821
        %v823 = vmul.f32 %v760, 1.442695
        %v824 = vpow.pop %v823
        %v825 = vlaneseq
        %v826 = vand.u32 %v825, 127
        %vm827 = vcmp.eq.s32.totalorder %v826, 8
        %v828 = vsel %vm827, 1, 0
        %v829 = vcvt.s32.f32 %v828
        %v830 = vadd.f32 %v372, %v829
        %v831 = vadd.f32 %v377, %v829
        %v832 = vadd.f32 %v382, %v829
        %v833 = vadd.f32 %v387, %v829
        %v834 = vadd.f32 %v392, %v829
        %v835 = vadd.f32 %v397, %v829
        %v836 = vadd.f32 %v402, %v829
        %v837 = vadd.f32 %v407, %v829
        %v838 = vadd.f32 %v412, %v829
        %v839 = vadd.f32 %v417, %v829
        %v840 = vadd.f32 %v422, %v829
        %v841 = vadd.f32 %v427, %v829
        %v842 = vadd.f32 %v432, %v829
        %v843 = vadd.f32 %v437, %v829
        %v844 = vadd.f32 %v442, %v829
        %v845 = vadd.f32 %v447, %v829
        %v846 = vadd.f32 %v452, %v829
        %v847 = vadd.f32 %v457, %v829
        %v848 = vadd.f32 %v462, %v829
        %v849 = vadd.f32 %v467, %v829
        %v850 = vadd.f32 %v472, %v829
        %v851 = vadd.f32 %v477, %v829
        %v852 = vadd.f32 %v482, %v829
        %v853 = vadd.f32 %v487, %v829
        %v854 = vadd.f32 %v492, %v829
        %v855 = vadd.f32 %v497, %v829
        %v856 = vadd.f32 %v502, %v829
        %v857 = vadd.f32 %v507, %v829
        %v858 = vadd.f32 %v512, %v829
        %v859 = vadd.f32 %v517, %v829
        %v860 = vadd.f32 %v522, %v829
        %v861 = vadd.f32 %v527, %v829
        %v862 = vmul.f32 %v762, %v830
        %v863 = vmul.f32 %v764, %v831
        %v864 = vmul.f32 %v766, %v832
        %v865 = vmul.f32 %v768, %v833
        %v866 = vmul.f32 %v770, %v834
        %v867 = vmul.f32 %v772, %v835
        %v868 = vmul.f32 %v774, %v836
        %v869 = vmul.f32 %v776, %v837
        %v870 = vmul.f32 %v778, %v838
        %v871 = vmul.f32 %v780, %v839
        %v872 = vmul.f32 %v782, %v840
        %v873 = vmul.f32 %v784, %v841
        %v874 = vmul.f32 %v786, %v842
        %v875 = vmul.f32 %v788, %v843
        %v876 = vmul.f32 %v790, %v844
        %v877 = vmul.f32 %v792, %v845
        %v878 = vmul.f32 %v794, %v846
        %v879 = vmul.f32 %v796, %v847
        %v880 = vmul.f32 %v798, %v848
        %v881 = vmul.f32 %v800, %v849
        %v882 = vmul.f32 %v802, %v850
        %v883 = vmul.f32 %v804, %v851
        %v884 = vmul.f32 %v806, %v852
        %v885 = vmul.f32 %v808, %v853
        %v886 = vmul.f32 %v810, %v854
        %v887 = vmul.f32 %v812, %v855
        %v888 = vmul.f32 %v814, %v856
        %v889 = vmul.f32 %v816, %v857
        %v890 = vmul.f32 %v818, %v858
        %v891 = vmul.f32 %v820, %v859
        %v892 = vmul.f32 %v822, %v860
        %v893 = vmul.f32 %v824, %v861
        %v894 = vpack.c.bf16 %v863, %v862
        %v895 = vpack.c.bf16 %v865, %v864
        %v896 = vpack.c.bf16 %v867, %v866
        %v897 = vpack.c.bf16 %v869, %v868
        %v898 = vpack.c.bf16 %v871, %v870
        %v899 = vpack.c.bf16 %v873, %v872
        %v900 = vpack.c.bf16 %v875, %v874
        %v901 = vpack.c.bf16 %v877, %v876
        %v902 = vpack.c.bf16 %v879, %v878
        %v903 = vpack.c.bf16 %v881, %v880
        %v904 = vpack.c.bf16 %v883, %v882
        %v905 = vpack.c.bf16 %v885, %v884
        %v906 = vpack.c.bf16 %v887, %v886
        %v907 = vpack.c.bf16 %v889, %v888
        %v908 = vpack.c.bf16 %v891, %v890
        %v909 = vpack.c.bf16 %v893, %v892
        %v926 = vunpack.c.l.b16 %v894
        %v927 = vunpack.c.h.b16 %v894
        %v928 = vunpack.c.l.b16 %v895
        %v929 = vunpack.c.h.b16 %v895
        %v930 = vunpack.c.l.b16 %v896
        %v931 = vunpack.c.h.b16 %v896
        %v932 = vunpack.c.l.b16 %v897
        %v933 = vunpack.c.h.b16 %v897
        %v934 = vunpack.c.l.b16 %v898
        %v935 = vunpack.c.h.b16 %v898
        %v936 = vunpack.c.l.b16 %v899
        %v937 = vunpack.c.h.b16 %v899
        %v938 = vunpack.c.l.b16 %v900
        %v939 = vunpack.c.h.b16 %v900
        %v940 = vunpack.c.l.b16 %v901
        %v941 = vunpack.c.h.b16 %v901
        %v942 = vunpack.c.l.b16 %v902
        %v943 = vunpack.c.h.b16 %v902
        %v944 = vunpack.c.l.b16 %v903
        %v945 = vunpack.c.h.b16 %v903
        %v946 = vunpack.c.l.b16 %v904
        %v947 = vunpack.c.h.b16 %v904
        %v948 = vunpack.c.l.b16 %v905
        %v949 = vunpack.c.h.b16 %v905
        %v950 = vunpack.c.l.b16 %v906
        %v951 = vunpack.c.h.b16 %v906
        %v952 = vunpack.c.l.b16 %v907
        %v953 = vunpack.c.h.b16 %v907
        %v954 = vunpack.c.l.b16 %v908
        %v955 = vunpack.c.h.b16 %v908
        %v956 = vunpack.c.l.b16 %v909
        %v957 = vunpack.c.h.b16 %v909
        %v958 = vpack.c.b16 %v926, %v926
        %v959 = vpack.c.b16 %v927, %v927
        %v960 = vpack.c.b16 %v928, %v928
        %v961 = vpack.c.b16 %v929, %v929
        %v962 = vpack.c.b16 %v930, %v930
        %v963 = vpack.c.b16 %v931, %v931
        %v964 = vpack.c.b16 %v932, %v932
        %v965 = vpack.c.b16 %v933, %v933
        %v966 = vpack.c.b16 %v934, %v934
        %v967 = vpack.c.b16 %v935, %v935
        %v968 = vpack.c.b16 %v936, %v936
        %v969 = vpack.c.b16 %v937, %v937
        %v970 = vpack.c.b16 %v938, %v938
        %v971 = vpack.c.b16 %v939, %v939
        %v972 = vpack.c.b16 %v940, %v940
        %v973 = vpack.c.b16 %v941, %v941
        %v974 = vpack.c.b16 %v942, %v942
        %v975 = vpack.c.b16 %v943, %v943
        %v976 = vpack.c.b16 %v944, %v944
        %v977 = vpack.c.b16 %v945, %v945
        %v978 = vpack.c.b16 %v946, %v946
        %v979 = vpack.c.b16 %v947, %v947
        %v980 = vpack.c.b16 %v948, %v948
        %v981 = vpack.c.b16 %v949, %v949
        %v982 = vpack.c.b16 %v950, %v950
        %v983 = vpack.c.b16 %v951, %v951
        %v984 = vpack.c.b16 %v952, %v952
        %v985 = vpack.c.b16 %v953, %v953
        %v986 = vpack.c.b16 %v954, %v954
        %v987 = vpack.c.b16 %v955, %v955
        %v988 = vpack.c.b16 %v956, %v956
        %v989 = vpack.c.b16 %v957, %v957
        %1022 = vst [vmem:[%s164] sm:$0xf] %v958
        %1023 = vst [vmem:[%s164 + $0x4] sm:$0xf] %v959
        %1024 = vst [vmem:[%s164 + $0x8] sm:$0xf] %v960
        %1025 = vst [vmem:[%s164 + $0xc] sm:$0xf] %v961
        %1026 = vst [vmem:[%s164 + $0x10] sm:$0xf] %v962
        %1027 = vst [vmem:[%s164 + $0x14] sm:$0xf] %v963
        %1028 = vst [vmem:[%s164 + $0x18] sm:$0xf] %v964
        %1029 = vst [vmem:[%s164 + $0x1c] sm:$0xf] %v965
        %1030 = vst [vmem:[%s164 + $0x20] sm:$0xf] %v966
        %1031 = vst [vmem:[%s164 + $0x24] sm:$0xf] %v967
        %1032 = vst [vmem:[%s164 + $0x28] sm:$0xf] %v968
        %1033 = vst [vmem:[%s164 + $0x2c] sm:$0xf] %v969
        %1034 = vst [vmem:[%s164 + $0x30] sm:$0xf] %v970
        %1035 = vst [vmem:[%s164 + $0x34] sm:$0xf] %v971
        %1036 = vst [vmem:[%s164 + $0x38] sm:$0xf] %v972
        %1037 = vst [vmem:[%s164 + $0x3c] sm:$0xf] %v973
        %1038 = vst [vmem:[%s164 + $0x40] sm:$0xf] %v974
        %1039 = vst [vmem:[%s164 + $0x44] sm:$0xf] %v975
        %1040 = vst [vmem:[%s164 + $0x48] sm:$0xf] %v976
        %1041 = vst [vmem:[%s164 + $0x4c] sm:$0xf] %v977
        %1042 = vst [vmem:[%s164 + $0x50] sm:$0xf] %v978
        %1043 = vst [vmem:[%s164 + $0x54] sm:$0xf] %v979
        %1044 = vst [vmem:[%s164 + $0x58] sm:$0xf] %v980
        %1045 = vst [vmem:[%s164 + $0x5c] sm:$0xf] %v981
        %1046 = vst [vmem:[%s164 + $0x60] sm:$0xf] %v982
        %1047 = vst [vmem:[%s164 + $0x64] sm:$0xf] %v983
        %1048 = vst [vmem:[%s164 + $0x68] sm:$0xf] %v984
        %1049 = vst [vmem:[%s164 + $0x6c] sm:$0xf] %v985
        %1050 = vst [vmem:[%s164 + $0x70] sm:$0xf] %v986
        %1051 = vst [vmem:[%s164 + $0x74] sm:$0xf] %v987
        %1052 = vst [vmem:[%s164 + $0x78] sm:$0xf] %v988
        %1053 = vst [vmem:[%s164 + $0x7c] sm:$0xf] %v989
        %s1054 = sand.u32 %s93, 1
        %s1055 = scalar_lea.sflag [#allocation3], %s1054
        %s1056 = sand.u32 %s93, 1
        %s1057 = smul.addr %s1056, 128
        %s1058 = scalar_lea.vmem [#allocation2], %s1057
        // Predicated region
        $region33: #{tpu_custom_call.1} parent=31 // pred_check
          %p1059 = pneg %p103
        $region34: #{tpu_custom_call.1} parent=31 // pred_check_branch
          %1061 = sbr.rel (%p1059) target = $region36
        $region35: #{tpu_custom_call.1} parent=31 // pred_region
          %s1062 = smul.u32 32, %s17
          %s1064 = ssub.s32 2048, 2048
          %1065 = vsyncadd %s1055, %s1064
          %s1066 = smul.addr %s1062, 64
          %s1067 = scalar_lea.hbm %s3, %s1066
          %s1068 = sshll.u32 %s1058, 4
          %s1069 = int_to_ptr.vmem [resolvable:$true] %s1068
          %1074 = dma.vmem_to_hbm [thread:$0]  %s1069, 2048, %s1067, %s1055, 64, 64, 4
        $region36: #{tpu_custom_call.1} parent=31 // pred_fallthru
          _
      $region32: #{tpu_custom_call.1} parent=5 // pred_fallthru
        _
      %p1075 = scmp.le.s32.totalorder 2, %s12
      // Predicated region
      $region37: #{tpu_custom_call.1} parent=5 // pred_check
        %p1076 = pneg %p1075
      $region38: #{tpu_custom_call.1} parent=5 // pred_check_branch
        %1078 = sbr.rel (%p1076) target = $region40
      $region39: #{tpu_custom_call.1} parent=5 // pred_region
        %s1079 = ssub.s32 %s12, 2
        // Predicated region
        $region41: #{tpu_custom_call.1} parent=39 // pred_check
          %p1080 = pneg %p109
        $region42: #{tpu_custom_call.1} parent=39 // pred_check_branch
          %1082 = sbr.rel (%p1080) target = $region44
        $region43: #{tpu_custom_call.1} parent=39 // pred_region
          %s1083 = sand.u32 %s94, 1
          %s1084 = scalar_lea.sflag [#allocation3], %s1083
          %s1085 = sand.u32 %s94, 1
          %s1086 = smul.addr %s1085, 128
          %s1087 = scalar_lea.vmem [#allocation2], %s1086
          %1088 = dma.done %s1084, 2048
        $region44: #{tpu_custom_call.1} parent=39 // pred_fallthru
          _
      $region40: #{tpu_custom_call.1} parent=5 // pred_fallthru
        _
    $region6: #{tpu_custom_call.1} parent=1 // loop_footer
      %s16 = sadd.s32 1, %s12
    $region7: #{tpu_custom_call.1} parent=1 // loop_footer_branch
      %11 = sbr.rel target = $region3
    $region8: #{tpu_custom_call.1} parent=1 // loop_exit
      _
    %1089 = vsyncpa [#allocation3], 1
    %s1090 = scalar_lea.sflag [#allocation3], 1
    %1091 = vsyncpa %s1090, 1

</llo_original>
